<compile_context>
chip_gen: v7x
topology: tpu7x:2x2x1
jax: 0.10.0
libtpu: 0.0.40
codegen_flags: <defaults>
</compile_context>

<pallas_src>
import functools

import jax
import jax.numpy as jnp
from jax import lax
from jax.experimental import pallas as pl
from jax.experimental.pallas import tpu as pltpu

EPS = 1e-8


def _round_up(n, m):
    return (n + m - 1) // m * m


def _dsconv_kernel(x_ref, wdw_ref, alpha_ref, gamma_ref, beta_ref, wpw_ref,
                   out_ref, *scratch,
                   kernel_size, dilation, padding, l_out, pre_strided):
    # x_ref:     stride==1: (B_tile, C_in, K)            raw input slab
    #            stride>1 : (KS, B_tile, C_in, L_pad)    pre-decimated dense taps
    # wdw_ref:   (C_in, KS)       depthwise weights
    # alpha_ref: (1,) in SMEM     PReLU slope (scalar path)
    # gamma_ref: (C_in, 1)        gLN scale
    # beta_ref:  (C_in, 1)        gLN shift
    # wpw_ref:   (C_out, C_in)    pointwise (1x1) conv weights
    # out_ref:   (B_tile, C_out, L_pad)  lane-dense output slab
    # scratch:   stride==1: (xpad_ref,) zero-halo VMEM buffer; stride>1: ()
    b_tile, c_out, l_pad = out_ref.shape
    c_in = wdw_ref.shape[0]

    wdw = wdw_ref[...]                                   # [C_in, KS]

    if pre_strided:
        taps = [x_ref[k] for k in range(kernel_size)]    # each (B_tile, C_in, L_pad)
    else:
        (xpad_ref,) = scratch
        k_len = x_ref.shape[2]
        # Zero only the halo columns; the data region [padding, padding+k_len) is
        # fully overwritten every step, so the big per-step zero-fill store is gone.
        # Done every step (not @pl.when(pid==0)): with "parallel" grid semantics each
        # TensorCore has its own scratch and only one core ever runs program_id == 0.
        if padding > 0:
            xpad_ref[:, :, :padding] = jnp.zeros(
                (b_tile, c_in, padding), xpad_ref.dtype)
        tail = xpad_ref.shape[2] - (padding + k_len)
        if tail > 0:
            xpad_ref[:, :, padding + k_len:] = jnp.zeros(
                (b_tile, c_in, tail), xpad_ref.dtype)
        xpad_ref[:, :, padding:padding + k_len] = x_ref[...]
        taps = [xpad_ref[:, :, k * dilation:k * dilation + l_pad]
                for k in range(kernel_size)]

    # ---- depthwise conv: static unroll over the small kernel taps (VPU FMAs) ----
    y = wdw[:, 0:1][None, :, :] * taps[0]
    for k in range(1, kernel_size):
        y = y + wdw[:, k:k + 1][None, :, :] * taps[k]

    # ---- PReLU (single shared slope, scalar from SMEM) ----
    alpha = alpha_ref[0]
    y = jnp.where(y > 0, y, alpha * y)

    # Lanes beyond the valid output length must not pollute the gLN statistics
    # (they are discarded by the wrapper / downstream consumers).
    lane = None
    if l_pad > l_out:
        lane = lax.broadcasted_iota(jnp.int32, (1, 1, l_pad), 2)
        y = jnp.where(lane < l_out, y, 0.0)

    # ---- Global Layer Norm: stable two-pass form (mean, then centered 2nd moment) ----
    inv_n = 1.0 / float(c_in * l_out)
    mean = jnp.sum(y, axis=(1, 2), keepdims=True) * inv_n          # [B,1,1]
    d = y - mean
    if lane is not None:
        d = jnp.where(lane < l_out, d, 0.0)
    var = jnp.sum(d * d, axis=(1, 2), keepdims=True) * inv_n       # [B,1,1]
    inv_std = lax.rsqrt(var + EPS)                                  # EUP rsqrt (free slot)
    yn = gamma_ref[...][None, :, :] * (d * inv_std) + beta_ref[...][None, :, :]

    # ---- pointwise 1x1 conv ----
    wpw = wpw_ref[...]                                              # [C_out, C_in]
    if c_in <= 16:
        # Tiny contraction dim: VPU broadcast-FMAs beat an almost-idle MXU pass.
        acc = wpw[:, 0:1][None, :, :] * yn[:, 0:1, :]
        for c in range(1, c_in):
            acc = acc + wpw[:, c:c + 1][None, :, :] * yn[:, c:c + 1, :]
        out_ref[...] = acc
    else:
        # Single batched, weight-stationary MXU contraction: bf16 inputs
        # (post-gLN activations are ~unit scale), f32 accumulate, output produced
        # directly in [B, C_out, L] layout -> one unmasked lane-dense store.
        wpw_b = jnp.broadcast_to(wpw.astype(jnp.bfloat16)[None],
                                 (b_tile, c_out, c_in))
        out_ref[...] = lax.dot_general(
            wpw_b, yn.astype(jnp.bfloat16),
            dimension_numbers=(((2,), (1,)), ((0,), (0,))),
            preferred_element_type=jnp.float32)


def _physical_vmem_bytes():
    """Per-TensorCore VMEM; conservative 64 MiB (v7x) fallback if the query fails."""
    try:
        info = pltpu.get_tpu_info()
        v = getattr(info, "vmem_capacity_bytes", None)
        if v:
            return int(v)
    except Exception:
        pass
    return 64 * 1024 * 1024


def depthwise_separable_conv(x, w_dw, alpha, gamma, beta, w_pw, *,
                             kernel_size, stride, padding, dilation,
                             batch_tile=None):
    """x: [M, C_in, K] float32 (NCL).  Returns [M, C_out, L_out] float32.

    w_dw : [C_in, kernel_size]  (PyTorch depthwise Conv1d weight [C_in,1,KS] squeezed)
    w_pw : [C_out, C_in]        (PyTorch pointwise Conv1d weight [C_out,C_in,1] squeezed)
    alpha: scalar PReLU slope;  gamma/beta: [C_in,1] gLN affine parameters.
    """
    m, c_in, k_len = x.shape
    c_out = w_pw.shape[0]
    l_out = (k_len + 2 * padding - dilation * (kernel_size - 1) - 1) // stride + 1
    l_pad = _round_up(l_out, 128)            # lane-dense output slab (unmasked stores)
    pre_strided = stride > 1

    # Width of the zero-halo scratch used by the stride==1 path.
    w_scr = _round_up(max((kernel_size - 1) * dilation + l_pad, padding + k_len), 128)

    # ---- generation-aware VMEM budget & batch tiling ----
    vmem_budget = _physical_vmem_bytes() * 3 // 4        # headroom for Mosaic scratch

    def _step_bytes(bt):
        if pre_strided:
            in_b = 2 * kernel_size * bt * c_in * l_pad   # double-buffered taps block
        else:
            in_b = 2 * bt * c_in * k_len + bt * c_in * w_scr
        out_b = 2 * bt * c_out * l_pad
        tmp_b = 4 * bt * c_in * l_pad                    # y, d, yn + slack
        return 4 * (in_b + out_b + tmp_b)

    if batch_tile is None:
        cands = [c for c in range(min(m, 16), 0, -1)
                 if m % c == 0 and _step_bytes(c) <= vmem_budget]
        if not cands:
            cands = [1]
        batch_tile = cands[-1]
        # Prefer >=2 grid steps and an even grid (v7x two-TC split + DMA pipelining),
        # then >=2 steps, then simply the largest fitting tile.
        for pred in (lambda c: (m // c) >= 2 and (m // c) % 2 == 0,
                     lambda c: (m // c) >= 2,
                     lambda c: True):
            sel = [c for c in cands if pred(c)]
            if sel:
                batch_tile = sel[0]
                break
    assert m % batch_tile == 0

    alpha_s = jnp.reshape(alpha, (1,)).astype(jnp.float32)     # SMEM scalar
    gamma2 = jnp.reshape(gamma, (c_in, 1)).astype(jnp.float32)
    beta2 = jnp.reshape(beta, (c_in, 1)).astype(jnp.float32)
    w_dw2 = jnp.reshape(w_dw, (c_in, kernel_size)).astype(jnp.float32)
    w_pw2 = jnp.reshape(w_pw, (c_out, c_in)).astype(jnp.float32)

    if pre_strided:
        # stride > 1 (rare): decimate each tap with plain XLA strided slices *outside*
        # the kernel so the depthwise path never issues lane-strided loads.
        x_pad = jnp.pad(x, ((0, 0), (0, 0), (padding, padding)))
        span = (l_out - 1) * stride + 1
        taps = [lax.slice(x_pad, (0, 0, k * dilation),
                          (m, c_in, k * dilation + span), (1, 1, stride))
                for k in range(kernel_size)]
        x_in = jnp.stack(taps, axis=0)                         # [KS, M, C_in, L_out]
        if l_pad != l_out:
            x_in = jnp.pad(x_in, ((0, 0), (0, 0), (0, 0), (0, l_pad - l_out)))
        x_spec = pl.BlockSpec((kernel_size, batch_tile, c_in, l_pad),
                              lambda b: (0, b, 0, 0))
        scratch_shapes = []
    else:
        x_in = x
        x_spec = pl.BlockSpec((batch_tile, c_in, k_len), lambda b: (b, 0, 0))
        scratch_shapes = [pltpu.VMEM((batch_tile, c_in, w_scr), jnp.float32)]

    kernel = functools.partial(
        _dsconv_kernel, kernel_size=kernel_size, dilation=dilation,
        padding=padding, l_out=l_out, pre_strided=pre_strided)

    # TODO(synk): for production sizes (C~512, L~8k+) add a length-axis grid with an
    # input halo and a tile-accumulated two-pass gLN so blocks fit v7x's 64 MiB VMEM.
    out_padded = pl.pallas_call(
        kernel,
        out_shape=jax.ShapeDtypeStruct((m, c_out, l_pad), jnp.float32),
        grid_spec=pltpu.PrefetchScalarGridSpec(
            num_scalar_prefetch=0,
            grid=(m // batch_tile,),
            in_specs=[
                x_spec,
                pl.BlockSpec((c_in, kernel_size), lambda b: (0, 0)),
                pl.BlockSpec(memory_space=pltpu.MemorySpace.SMEM),   # PReLU slope
                pl.BlockSpec((c_in, 1), lambda b: (0, 0)),
                pl.BlockSpec((c_in, 1), lambda b: (0, 0)),
                pl.BlockSpec((c_out, c_in), lambda b: (0, 0)),
            ],
            out_specs=pl.BlockSpec((batch_tile, c_out, l_pad), lambda b: (b, 0, 0)),
            scratch_shapes=scratch_shapes,
        ),
        compiler_params=pltpu.CompilerParams(
            dimension_semantics=("parallel",),
            vmem_limit_bytes=int(vmem_budget)),
    )(x_in, w_dw2, alpha_s, gamma2, beta2, w_pw2)

    if l_pad != l_out:
        # TODO(synk): keep downstream consumers on the lane-padded layout (or fuse this
        # slice into the next op) to avoid an extra HBM round trip of the output.
        out_padded = out_padded[:, :, :l_out]
    return out_padded


def _reference(x, w_dw, alpha, gamma, beta, w_pw, *,
               kernel_size, stride, padding, dilation):
    """Pure-JAX reference replicating the PyTorch forward (sanity check)."""
    m, c_in, k_len = x.shape
    l_out = (k_len + 2 * padding - dilation * (kernel_size - 1) - 1) // stride + 1
    w_dw = jnp.reshape(w_dw, (c_in, kernel_size))
    w_pw = jnp.reshape(w_pw, (-1, c_in))
    x_pad = jnp.pad(x, ((0, 0), (0, 0), (padding, padding)))
    y = jnp.zeros((m, c_in, l_out), jnp.float32)
    for k in range(kernel_size):
        start = k * dilation
        stop = start + (l_out - 1) * stride + 1
        y = y + w_dw[None, :, k:k + 1] * x_pad[:, :, start:stop:stride]
    y = jnp.where(y > 0, y, alpha * y)
    mean = jnp.mean(y, axis=(1, 2), keepdims=True)
    var = jnp.mean((y - mean) ** 2, axis=(1, 2), keepdims=True)
    y = (jnp.reshape(gamma, (1, c_in, 1)) * (y - mean) / jnp.sqrt(var + EPS)
         + jnp.reshape(beta, (1, c_in, 1)))
    return jnp.einsum("oc,mcl->mol", w_pw, y)


if __name__ == "__main__":
    def _run_case(name, *, m, k_len, c_in, c_out, kernel_size, stride, padding,
                  dilation, tol, seed):
        key = jax.random.PRNGKey(seed)
        k1, k2, k3, k4, k5 = jax.random.split(key, 5)
        x = jax.random.normal(k1, (m, c_in, k_len), dtype=jnp.float32)
        w_dw = jax.random.normal(k2, (c_in, kernel_size), dtype=jnp.float32) * 0.1
        w_pw = jax.random.normal(k3, (c_out, c_in), dtype=jnp.float32) * 0.1
        alpha = jnp.array(0.25, dtype=jnp.float32)          # PReLU default init
        gamma = 1.0 + 0.1 * jax.random.normal(k4, (c_in, 1), dtype=jnp.float32)
        beta = 0.1 * jax.random.normal(k5, (c_in, 1), dtype=jnp.float32)

        out = depthwise_separable_conv(
            x, w_dw, alpha, gamma, beta, w_pw,
            kernel_size=kernel_size, stride=stride, padding=padding,
            dilation=dilation)
        out = jax.block_until_ready(out)

        ref = _reference(x, w_dw, alpha, gamma, beta, w_pw,
                         kernel_size=kernel_size, stride=stride,
                         padding=padding, dilation=dilation)
        assert out.shape == ref.shape, (name, out.shape, ref.shape)
        assert jnp.allclose(out, ref, atol=tol, rtol=tol), (
            name, float(jnp.max(jnp.abs(out - ref))))

    # 1) VPU pointwise path + in-kernel halo + masked gLN tail (l_out=120 < 128).
    _run_case("vpu_halo", m=2, k_len=120, c_in=8, c_out=16,
              kernel_size=3, stride=1, padding=2, dilation=2, tol=1e-4, seed=0)
    # 2) MXU bf16 pointwise path, batch-folded (batch_tile=2, grid of 2 steps).
    _run_case("mxu_bf16", m=4, k_len=256, c_in=32, c_out=32,
              kernel_size=3, stride=1, padding=1, dilation=1, tol=3e-2, seed=1)
    # 3) stride>1 path: taps pre-decimated by the wrapper (dense in-kernel loads).
    _run_case("strided", m=2, k_len=250, c_in=8, c_out=8,
              kernel_size=3, stride=2, padding=1, dilation=1, tol=1e-4, seed=2)

    print("KERNEL_OK")
</pallas_src>

<mosaic_0001>
module attributes {stable_mosaic.version = 11 : i64} {
  func.func @_dsconv_kernel(%arg0: i32, %arg1: memref<1x8x120xf32, #tpu.memory_space<vmem>>, %arg2: memref<8x3xf32, #tpu.memory_space<vmem>>, %arg3: memref<1xf32, #tpu.memory_space<smem>>, %arg4: memref<8x1xf32, #tpu.memory_space<vmem>>, %arg5: memref<8x1xf32, #tpu.memory_space<vmem>>, %arg6: memref<16x8xf32, #tpu.memory_space<vmem>>, %arg7: memref<1x16x128xf32, #tpu.memory_space<vmem>>, %arg8: memref<1x8x256xf32, #tpu.memory_space<vmem>>) attributes {dimension_semantics = [#tpu.dimension_semantics<parallel>], iteration_bounds = array<i64: 2>, scalar_prefetch = 0 : i64, scratch_operands = 1 : i64, tpu.core_type = #tpu.core_type<tc>, window_params = [{transform_indices = @transform_0, window_bounds = array<i64: 1, 8, 120>}, {pipeline_mode = #tpu.pipeline_mode<synchronous>, transform_indices = @transform_1, window_bounds = array<i64: 8, 3>}, {transform_indices = @transform_2, window_bounds = array<i64: 1>}, {pipeline_mode = #tpu.pipeline_mode<synchronous>, transform_indices = @transform_3, window_bounds = array<i64: 8, 1>}, {pipeline_mode = #tpu.pipeline_mode<synchronous>, transform_indices = @transform_4, window_bounds = array<i64: 8, 1>}, {pipeline_mode = #tpu.pipeline_mode<synchronous>, transform_indices = @transform_5, window_bounds = array<i64: 16, 8>}, {transform_indices = @transform_6, window_bounds = array<i64: 1, 16, 128>}]} {
    %c0 = arith.constant 0 : index
    %c0_0 = arith.constant 0 : index
    %0 = vector.load %arg2[%c0, %c0_0] : memref<8x3xf32, #tpu.memory_space<vmem>>, vector<8x3xf32>
    %cst = arith.constant 0.000000e+00 : f32
    %1 = vector.broadcast %cst : f32 to vector<1x8x2xf32>
    %c0_1 = arith.constant 0 : index
    %c0_2 = arith.constant 0 : index
    %c0_3 = arith.constant 0 : index
    %2 = vector.load %arg8[%c0_1, %c0_2, %c0_3] : memref<1x8x256xf32, #tpu.memory_space<vmem>>, vector<1x8x2xf32>
    tpu.vector_store %arg8[%c0_1, %c0_2, %c0_3], %1 {strides = array<i32>} : memref<1x8x256xf32, #tpu.memory_space<vmem>>, vector<1x8x2xf32>,
    %cst_4 = arith.constant 0.000000e+00 : f32
    %3 = vector.broadcast %cst_4 : f32 to vector<1x8x134xf32>
    %c0_5 = arith.constant 0 : index
    %c0_6 = arith.constant 0 : index
    %c122 = arith.constant 122 : index
    %4 = vector.load %arg8[%c0_5, %c0_6, %c122] : memref<1x8x256xf32, #tpu.memory_space<vmem>>, vector<1x8x134xf32>
    tpu.vector_store %arg8[%c0_5, %c0_6, %c122], %3 {strides = array<i32>} : memref<1x8x256xf32, #tpu.memory_space<vmem>>, vector<1x8x134xf32>,
    %c0_7 = arith.constant 0 : index
    %c0_8 = arith.constant 0 : index
    %c0_9 = arith.constant 0 : index
    %5 = vector.load %arg1[%c0_7, %c0_8, %c0_9] : memref<1x8x120xf32, #tpu.memory_space<vmem>>, vector<1x8x120xf32>
    %c0_10 = arith.constant 0 : index
    %c0_11 = arith.constant 0 : index
    %c2 = arith.constant 2 : index
    %6 = vector.load %arg8[%c0_10, %c0_11, %c2] : memref<1x8x256xf32, #tpu.memory_space<vmem>>, vector<1x8x120xf32>
    tpu.vector_store %arg8[%c0_10, %c0_11, %c2], %5 {strides = array<i32>} : memref<1x8x256xf32, #tpu.memory_space<vmem>>, vector<1x8x120xf32>,
    %c0_12 = arith.constant 0 : index
    %c0_13 = arith.constant 0 : index
    %c0_14 = arith.constant 0 : index
    %7 = vector.load %arg8[%c0_12, %c0_13, %c0_14] : memref<1x8x256xf32, #tpu.memory_space<vmem>>, vector<1x8x128xf32>
    %c0_15 = arith.constant 0 : index
    %c0_16 = arith.constant 0 : index
    %c2_17 = arith.constant 2 : index
    %8 = vector.load %arg8[%c0_15, %c0_16, %c2_17] : memref<1x8x256xf32, #tpu.memory_space<vmem>>, vector<1x8x128xf32>
    %c0_18 = arith.constant 0 : index
    %c0_19 = arith.constant 0 : index
    %c4 = arith.constant 4 : index
    %9 = vector.load %arg8[%c0_18, %c0_19, %c4] : memref<1x8x256xf32, #tpu.memory_space<vmem>>, vector<1x8x128xf32>
    %10 = vector.extract_strided_slice %0 {offsets = [0, 0], sizes = [8, 1], strides = [1, 1]} : vector<8x3xf32> to vector<8x1xf32>
    %11 = vector.shape_cast %10 : vector<8x1xf32> to vector<1x8x1xf32>
    %12 = vector.broadcast %11 : vector<1x8x1xf32> to vector<1x8x128xf32>
    %13 = arith.mulf %12, %7 : vector<1x8x128xf32>
    %14 = vector.extract_strided_slice %0 {offsets = [0, 1], sizes = [8, 1], strides = [1, 1]} : vector<8x3xf32> to vector<8x1xf32>
    %15 = vector.shape_cast %14 : vector<8x1xf32> to vector<1x8x1xf32>
    %16 = vector.broadcast %15 : vector<1x8x1xf32> to vector<1x8x128xf32>
    %17 = arith.mulf %16, %8 : vector<1x8x128xf32>
    %18 = arith.addf %13, %17 : vector<1x8x128xf32>
    %19 = vector.extract_strided_slice %0 {offsets = [0, 2], sizes = [8, 1], strides = [1, 1]} : vector<8x3xf32> to vector<8x1xf32>
    %20 = vector.shape_cast %19 : vector<8x1xf32> to vector<1x8x1xf32>
    %21 = vector.broadcast %20 : vector<1x8x1xf32> to vector<1x8x128xf32>
    %22 = arith.mulf %21, %9 : vector<1x8x128xf32>
    %23 = arith.addf %18, %22 : vector<1x8x128xf32>
    %c0_20 = arith.constant 0 : index
    %24 = memref.load %arg3[%c0_20] : memref<1xf32, #tpu.memory_space<smem>>
    %cst_21 = arith.constant 0.000000e+00 : f32
    %25 = vector.broadcast %cst_21 : f32 to vector<1x8x128xf32>
    %26 = arith.cmpf ogt, %23, %25 : vector<1x8x128xf32>
    %27 = vector.broadcast %24 : f32 to vector<1x8x128xf32>
    %28 = arith.mulf %27, %23 : vector<1x8x128xf32>
    %29 = arith.select %26, %23, %28 : vector<1x8x128xi1>, vector<1x8x128xf32>
    %30 = tpu.iota {dimensions = array<i32: 2>} : vector<1x1x128xi32>
    %c120_i32 = arith.constant 120 : i32
    %31 = vector.broadcast %c120_i32 : i32 to vector<1x1x128xi32>
    %32 = arith.cmpi slt, %30, %31 : vector<1x1x128xi32>
    %cst_22 = arith.constant 0.000000e+00 : f32
    %33 = vector.shape_cast %32 : vector<1x1x128xi1> to vector<1x1x128xi1>
    %34 = vector.broadcast %33 : vector<1x1x128xi1> to vector<1x8x128xi1>
    %35 = vector.broadcast %cst_22 : f32 to vector<1x8x128xf32>
    %36 = arith.select %34, %29, %35 : vector<1x8x128xi1>, vector<1x8x128xf32>
    %cst_23 = arith.constant dense<0.000000e+00> : vector<1xf32>
    %37 = vector.multi_reduction <add>, %36, %cst_23 [1, 2] : vector<1x8x128xf32> to vector<1xf32>
    %38 = vector.shape_cast %37 : vector<1xf32> to vector<1x1x1xf32>
    %cst_24 = arith.constant 0.00104166672 : f32
    %39 = vector.broadcast %cst_24 : f32 to vector<1x1x1xf32>
    %40 = arith.mulf %38, %39 : vector<1x1x1xf32>
    %41 = vector.broadcast %40 : vector<1x1x1xf32> to vector<1x8x128xf32>
    %42 = arith.subf %36, %41 : vector<1x8x128xf32>
    %c120_i32_25 = arith.constant 120 : i32
    %43 = vector.broadcast %c120_i32_25 : i32 to vector<1x1x128xi32>
    %44 = arith.cmpi slt, %30, %43 : vector<1x1x128xi32>
    %cst_26 = arith.constant 0.000000e+00 : f32
    %45 = vector.shape_cast %44 : vector<1x1x128xi1> to vector<1x1x128xi1>
    %46 = vector.broadcast %45 : vector<1x1x128xi1> to vector<1x8x128xi1>
    %47 = vector.broadcast %cst_26 : f32 to vector<1x8x128xf32>
    %48 = arith.select %46, %42, %47 : vector<1x8x128xi1>, vector<1x8x128xf32>
    %49 = arith.mulf %48, %48 : vector<1x8x128xf32>
    %cst_27 = arith.constant dense<0.000000e+00> : vector<1xf32>
    %50 = vector.multi_reduction <add>, %49, %cst_27 [1, 2] : vector<1x8x128xf32> to vector<1xf32>
    %51 = vector.shape_cast %50 : vector<1xf32> to vector<1x1x1xf32>
    %cst_28 = arith.constant 0.00104166672 : f32
    %52 = vector.broadcast %cst_28 : f32 to vector<1x1x1xf32>
    %53 = arith.mulf %51, %52 : vector<1x1x1xf32>
    %cst_29 = arith.constant 9.99999993E-9 : f32
    %54 = vector.broadcast %cst_29 : f32 to vector<1x1x1xf32>
    %55 = arith.addf %53, %54 : vector<1x1x1xf32>
    %56 = math.rsqrt %55 : vector<1x1x1xf32>
    %c0_30 = arith.constant 0 : index
    %c0_31 = arith.constant 0 : index
    %57 = vector.load %arg4[%c0_30, %c0_31] : memref<8x1xf32, #tpu.memory_space<vmem>>, vector<8x1xf32>
    %58 = vector.shape_cast %57 : vector<8x1xf32> to vector<1x8x1xf32>
    %59 = vector.broadcast %56 : vector<1x1x1xf32> to vector<1x8x128xf32>
    %60 = arith.mulf %48, %59 : vector<1x8x128xf32>
    %61 = vector.broadcast %58 : vector<1x8x1xf32> to vector<1x8x128xf32>
    %62 = arith.mulf %61, %60 : vector<1x8x128xf32>
    %c0_32 = arith.constant 0 : index
    %c0_33 = arith.constant 0 : index
    %63 = vector.load %arg5[%c0_32, %c0_33] : memref<8x1xf32, #tpu.memory_space<vmem>>, vector<8x1xf32>
    %64 = vector.shape_cast %63 : vector<8x1xf32> to vector<1x8x1xf32>
    %65 = vector.broadcast %64 : vector<1x8x1xf32> to vector<1x8x128xf32>
    %66 = arith.addf %62, %65 : vector<1x8x128xf32>
    %c0_34 = arith.constant 0 : index
    %c0_35 = arith.constant 0 : index
    %67 = vector.load %arg6[%c0_34, %c0_35] : memref<16x8xf32, #tpu.memory_space<vmem>>, vector<16x8xf32>
    %68 = vector.extract_strided_slice %67 {offsets = [0, 0], sizes = [16, 1], strides = [1, 1]} : vector<16x8xf32> to vector<16x1xf32>
    %69 = vector.shape_cast %68 : vector<16x1xf32> to vector<1x16x1xf32>
    %70 = vector.extract_strided_slice %66 {offsets = [0, 0, 0], sizes = [1, 1, 128], strides = [1, 1, 1]} : vector<1x8x128xf32> to vector<1x1x128xf32>
    %71 = vector.broadcast %69 : vector<1x16x1xf32> to vector<1x16x128xf32>
    %72 = vector.broadcast %70 : vector<1x1x128xf32> to vector<1x16x128xf32>
    %73 = arith.mulf %71, %72 : vector<1x16x128xf32>
    %74 = vector.extract_strided_slice %67 {offsets = [0, 1], sizes = [16, 1], strides = [1, 1]} : vector<16x8xf32> to vector<16x1xf32>
    %75 = vector.shape_cast %74 : vector<16x1xf32> to vector<1x16x1xf32>
    %76 = vector.extract_strided_slice %66 {offsets = [0, 1, 0], sizes = [1, 1, 128], strides = [1, 1, 1]} : vector<1x8x128xf32> to vector<1x1x128xf32>
    %77 = vector.broadcast %75 : vector<1x16x1xf32> to vector<1x16x128xf32>
    %78 = vector.broadcast %76 : vector<1x1x128xf32> to vector<1x16x128xf32>
    %79 = arith.mulf %77, %78 : vector<1x16x128xf32>
    %80 = arith.addf %73, %79 : vector<1x16x128xf32>
    %81 = vector.extract_strided_slice %67 {offsets = [0, 2], sizes = [16, 1], strides = [1, 1]} : vector<16x8xf32> to vector<16x1xf32>
    %82 = vector.shape_cast %81 : vector<16x1xf32> to vector<1x16x1xf32>
    %83 = vector.extract_strided_slice %66 {offsets = [0, 2, 0], sizes = [1, 1, 128], strides = [1, 1, 1]} : vector<1x8x128xf32> to vector<1x1x128xf32>
    %84 = vector.broadcast %82 : vector<1x16x1xf32> to vector<1x16x128xf32>
    %85 = vector.broadcast %83 : vector<1x1x128xf32> to vector<1x16x128xf32>
    %86 = arith.mulf %84, %85 : vector<1x16x128xf32>
    %87 = arith.addf %80, %86 : vector<1x16x128xf32>
    %88 = vector.extract_strided_slice %67 {offsets = [0, 3], sizes = [16, 1], strides = [1, 1]} : vector<16x8xf32> to vector<16x1xf32>
    %89 = vector.shape_cast %88 : vector<16x1xf32> to vector<1x16x1xf32>
    %90 = vector.extract_strided_slice %66 {offsets = [0, 3, 0], sizes = [1, 1, 128], strides = [1, 1, 1]} : vector<1x8x128xf32> to vector<1x1x128xf32>
    %91 = vector.broadcast %89 : vector<1x16x1xf32> to vector<1x16x128xf32>
    %92 = vector.broadcast %90 : vector<1x1x128xf32> to vector<1x16x128xf32>
    %93 = arith.mulf %91, %92 : vector<1x16x128xf32>
    %94 = arith.addf %87, %93 : vector<1x16x128xf32>
    %95 = vector.extract_strided_slice %67 {offsets = [0, 4], sizes = [16, 1], strides = [1, 1]} : vector<16x8xf32> to vector<16x1xf32>
    %96 = vector.shape_cast %95 : vector<16x1xf32> to vector<1x16x1xf32>
    %97 = vector.extract_strided_slice %66 {offsets = [0, 4, 0], sizes = [1, 1, 128], strides = [1, 1, 1]} : vector<1x8x128xf32> to vector<1x1x128xf32>
    %98 = vector.broadcast %96 : vector<1x16x1xf32> to vector<1x16x128xf32>
    %99 = vector.broadcast %97 : vector<1x1x128xf32> to vector<1x16x128xf32>
    %100 = arith.mulf %98, %99 : vector<1x16x128xf32>
    %101 = arith.addf %94, %100 : vector<1x16x128xf32>
    %102 = vector.extract_strided_slice %67 {offsets = [0, 5], sizes = [16, 1], strides = [1, 1]} : vector<16x8xf32> to vector<16x1xf32>
    %103 = vector.shape_cast %102 : vector<16x1xf32> to vector<1x16x1xf32>
    %104 = vector.extract_strided_slice %66 {offsets = [0, 5, 0], sizes = [1, 1, 128], strides = [1, 1, 1]} : vector<1x8x128xf32> to vector<1x1x128xf32>
    %105 = vector.broadcast %103 : vector<1x16x1xf32> to vector<1x16x128xf32>
    %106 = vector.broadcast %104 : vector<1x1x128xf32> to vector<1x16x128xf32>
    %107 = arith.mulf %105, %106 : vector<1x16x128xf32>
    %108 = arith.addf %101, %107 : vector<1x16x128xf32>
    %109 = vector.extract_strided_slice %67 {offsets = [0, 6], sizes = [16, 1], strides = [1, 1]} : vector<16x8xf32> to vector<16x1xf32>
    %110 = vector.shape_cast %109 : vector<16x1xf32> to vector<1x16x1xf32>
    %111 = vector.extract_strided_slice %66 {offsets = [0, 6, 0], sizes = [1, 1, 128], strides = [1, 1, 1]} : vector<1x8x128xf32> to vector<1x1x128xf32>
    %112 = vector.broadcast %110 : vector<1x16x1xf32> to vector<1x16x128xf32>
    %113 = vector.broadcast %111 : vector<1x1x128xf32> to vector<1x16x128xf32>
    %114 = arith.mulf %112, %113 : vector<1x16x128xf32>
    %115 = arith.addf %108, %114 : vector<1x16x128xf32>
    %116 = vector.extract_strided_slice %67 {offsets = [0, 7], sizes = [16, 1], strides = [1, 1]} : vector<16x8xf32> to vector<16x1xf32>
    %117 = vector.shape_cast %116 : vector<16x1xf32> to vector<1x16x1xf32>
    %118 = vector.extract_strided_slice %66 {offsets = [0, 7, 0], sizes = [1, 1, 128], strides = [1, 1, 1]} : vector<1x8x128xf32> to vector<1x1x128xf32>
    %119 = vector.broadcast %117 : vector<1x16x1xf32> to vector<1x16x128xf32>
    %120 = vector.broadcast %118 : vector<1x1x128xf32> to vector<1x16x128xf32>
    %121 = arith.mulf %119, %120 : vector<1x16x128xf32>
    %122 = arith.addf %115, %121 : vector<1x16x128xf32>
    %c0_36 = arith.constant 0 : index
    %c0_37 = arith.constant 0 : index
    %c0_38 = arith.constant 0 : index
    %123 = vector.load %arg7[%c0_36, %c0_37, %c0_38] : memref<1x16x128xf32, #tpu.memory_space<vmem>>, vector<1x16x128xf32>
    tpu.vector_store %arg7[%c0_36, %c0_37, %c0_38], %122 {strides = array<i32>} : memref<1x16x128xf32, #tpu.memory_space<vmem>>, vector<1x16x128xf32>,
    return
  }
  func.func @transform_0(%arg0: i32) -> (i32, i32, i32) {
    %c0_i32 = arith.constant 0 : i32
    %c0_i32_0 = arith.constant 0 : i32
    %c0_i32_1 = arith.constant 0 : i32
    return %arg0, %c0_i32, %c0_i32_0 : i32, i32, i32
  }
  func.func @transform_1(%arg0: i32) -> (i32, i32) {
    %c0_i32 = arith.constant 0 : i32
    %c0_i32_0 = arith.constant 0 : i32
    %c0_i32_1 = arith.constant 0 : i32
    return %c0_i32, %c0_i32_0 : i32, i32
  }
  func.func @transform_2(%arg0: i32) -> i32 {
    %c0_i32 = arith.constant 0 : i32
    %c0_i32_0 = arith.constant 0 : i32
    return %c0_i32 : i32
  }
  func.func @transform_3(%arg0: i32) -> (i32, i32) {
    %c0_i32 = arith.constant 0 : i32
    %c0_i32_0 = arith.constant 0 : i32
    %c0_i32_1 = arith.constant 0 : i32
    return %c0_i32, %c0_i32_0 : i32, i32
  }
  func.func @transform_4(%arg0: i32) -> (i32, i32) {
    %c0_i32 = arith.constant 0 : i32
    %c0_i32_0 = arith.constant 0 : i32
    %c0_i32_1 = arith.constant 0 : i32
    return %c0_i32, %c0_i32_0 : i32, i32
  }
  func.func @transform_5(%arg0: i32) -> (i32, i32) {
    %c0_i32 = arith.constant 0 : i32
    %c0_i32_0 = arith.constant 0 : i32
    %c0_i32_1 = arith.constant 0 : i32
    return %c0_i32, %c0_i32_0 : i32, i32
  }
  func.func @transform_6(%arg0: i32) -> (i32, i32, i32) {
    %c0_i32 = arith.constant 0 : i32
    %c0_i32_0 = arith.constant 0 : i32
    %c0_i32_1 = arith.constant 0 : i32
    return %arg0, %c0_i32, %c0_i32_0 : i32, i32, i32
  }
}

</mosaic_0001>

<llo_original>
// kernel: tpu_custom_call.1
$region0: #{tpu_custom_call.1}
  #allocation0 [shape = 'u32[]', space=smem, size = 0x4, offset = 0x4, fixed_abs, tag = 'smem constant byte address 0x4 - core index']
  #allocation1 [shape = 'u32[144,128]{1,0:T(1,128)}', space=vmem, size = 0x12000, scoped, tag = 'internal scratch']
  #allocation2 [shape = 'f32[1,8,256]{2,1,0:T(8,128)}', space=vmem, size = 0x2000, scoped, tag = 'scratch operand']
  #allocation3 [shape = 'f32[1]{0:T(128)S(6)}', space=smem, size = 0x200, scoped, tag = 'scoped memory for tpu_custom_call.1']
  %s0 = inlined_call_operand.vmem [shape: f32[2,8,120], index: 0, kind: input, shape index: {}]
  %s1 = inlined_call_operand.vmem [shape: f32[8,3], index: 1, kind: input, shape index: {}]
  %s2 = inlined_call_operand.<no memory space> [shape: f32[1], index: 2, kind: input, shape index: {}]
  %s3 = inlined_call_operand.vmem [shape: f32[8,1], index: 3, kind: input, shape index: {}]
  %s4 = inlined_call_operand.vmem [shape: f32[8,1], index: 4, kind: input, shape index: {}]
  %s5 = inlined_call_operand.vmem [shape: f32[16,8], index: 5, kind: input, shape index: {}]
  %s6 = inlined_call_operand.hbm [shape: f32[2,16,128], index: 6, kind: output, shape index: {}]
  %s7 = sld [smem:[#allocation0]]
  $region57: #{tpu_custom_call.1} parent=0
    _
  %s9 = ssub.s32 1, %s7
  %s10 = scalar_select 0, %s9, %s7
  %11 = sst [smem:[#allocation3]] %s2
  $region1: #{tpu_custom_call.1} parent=0
    #allocation4 [shape = 'u8[16384]{0}', space=vmem, size = 0x4000, scoped, tag = 'output window, operand 0']
    #allocation5 [shape = 's32[2]{0}', space=sflag, size = 0x8, scoped, tag = 'scoped memory for tpu_custom_call.1']
    %12 = vsyncpa [#allocation5], 0
    %s13 = scalar_lea.sflag [#allocation5], 1
    %14 = vsyncpa %s13, 0
    loop: start=0, step=1, limit=4
    $region2: #{tpu_custom_call.1} parent=1 // loop_pre_header
      _
    $region3: #{tpu_custom_call.1} parent=1 // loop_header
      %s16 = sphi 0, %s20
      %p17 = scmp.ge.s32.totalorder %s16, 4
      %s26 = sphi 0, %s28
      %s29 = sphi 0, %s26
      %s30 = sphi 0, %s29
      %s46 = sphi 0, %s30
      %s50 = sphi 0, %s50
      %s52 = sphi 0, %s50
      %s53 = sphi 0, %s52
      %s67 = sphi 0, %s53
      %s71 = sphi 0, %s71
      %s73 = sphi 0, %s71
      %s74 = sphi 0, %s73
      %s88 = sphi 0, %s74
      %s92 = sphi 0, %s92
      %s94 = sphi 0, %s92
      %s95 = sphi 0, %s94
      %s109 = sphi 0, %s95
      %s113 = sphi 0, %s113
      %s115 = sphi 0, %s113
      %s116 = sphi 0, %s115
      %s130 = sphi 0, %s116
      %s134 = sphi 0, %s134
      %s136 = sphi 0, %s134
      %s137 = sphi 0, %s136
      %s151 = sphi 0, %s137
      %s157 = sphi 0, %s159
      %s160 = sphi 0, %s157
      %s161 = sphi 0, %s160
      %s177 = sphi 0, %s161
    $region4: #{tpu_custom_call.1} parent=1 // loop_header_branch
      %19 = sbr.rel (%p17) target = $region8
    $region5: #{tpu_custom_call.1} parent=1 // loop_body
      %s21 = ssub.s32 %s16, 1
      %s22 = ssub.s32 %s16, 2
      %s23 = sadd.s32 %s16, 1
      %s24 = ssub.s32 %s16, %s23
      %p25 = scmp.eq.s32.totalorder %s24, 0
      %s27 = sadd.s32 %s26, 1
      %s28 = scalar_select %p25, %s26, %s27
      %p31 = pneg %p25
      %p32 = scmp.eq.s32.totalorder %s16, 1
      %p33 = por %p31, %p32
      %p34 = scmp.ne.s32.totalorder %s26, %s29
      %p35 = scmp.eq.s32.totalorder %s16, 0
      %p36 = por %p34, %p35
      %p37 = scmp.ne.s32.totalorder %s26, %s29
      %p38 = scmp.eq.s32.totalorder %s21, 1
      %p39 = por %p37, %p38
      %p40 = scmp.ne.s32.totalorder %s29, %s30
      %p41 = scmp.eq.s32.totalorder %s21, 0
      %p42 = por %p40, %p41
      %p43 = scmp.ne.s32.totalorder %s29, %s30
      %p44 = scmp.eq.s32.totalorder %s22, 1
      %p45 = por %p43, %p44
      %p47 = scmp.ne.s32.totalorder %s30, %s46
      %p48 = scmp.eq.s32.totalorder %s22, 0
      %p49 = por %p47, %p48
      %s51 = sadd.s32 %s50, 1
      %p54 = scmp.eq.s32.totalorder %s16, 1
      %p55 = scmp.ne.s32.totalorder %s50, %s52
      %p56 = scmp.eq.s32.totalorder %s16, 0
      %p57 = por %p55, %p56
      %p58 = scmp.ne.s32.totalorder %s50, %s52
      %p59 = scmp.eq.s32.totalorder %s21, 1
      %p60 = por %p58, %p59
      %p61 = scmp.ne.s32.totalorder %s52, %s53
      %p62 = scmp.eq.s32.totalorder %s21, 0
      %p63 = por %p61, %p62
      %p64 = scmp.ne.s32.totalorder %s52, %s53
      %p65 = scmp.eq.s32.totalorder %s22, 1
      %p66 = por %p64, %p65
      %p68 = scmp.ne.s32.totalorder %s53, %s67
      %p69 = scmp.eq.s32.totalorder %s22, 0
      %p70 = por %p68, %p69
      %s72 = sadd.s32 %s71, 1
      %p75 = scmp.eq.s32.totalorder %s16, 1
      %p76 = scmp.ne.s32.totalorder %s71, %s73
      %p77 = scmp.eq.s32.totalorder %s16, 0
      %p78 = por %p76, %p77
      %p79 = scmp.ne.s32.totalorder %s71, %s73
      %p80 = scmp.eq.s32.totalorder %s21, 1
      %p81 = por %p79, %p80
      %p82 = scmp.ne.s32.totalorder %s73, %s74
      %p83 = scmp.eq.s32.totalorder %s21, 0
      %p84 = por %p82, %p83
      %p85 = scmp.ne.s32.totalorder %s73, %s74
      %p86 = scmp.eq.s32.totalorder %s22, 1
      %p87 = por %p85, %p86
      %p89 = scmp.ne.s32.totalorder %s74, %s88
      %p90 = scmp.eq.s32.totalorder %s22, 0
      %p91 = por %p89, %p90
      %s93 = sadd.s32 %s92, 1
      %p96 = scmp.eq.s32.totalorder %s16, 1
      %p97 = scmp.ne.s32.totalorder %s92, %s94
      %p98 = scmp.eq.s32.totalorder %s16, 0
      %p99 = por %p97, %p98
      %p100 = scmp.ne.s32.totalorder %s92, %s94
      %p101 = scmp.eq.s32.totalorder %s21, 1
      %p102 = por %p100, %p101
      %p103 = scmp.ne.s32.totalorder %s94, %s95
      %p104 = scmp.eq.s32.totalorder %s21, 0
      %p105 = por %p103, %p104
      %p106 = scmp.ne.s32.totalorder %s94, %s95
      %p107 = scmp.eq.s32.totalorder %s22, 1
      %p108 = por %p106, %p107
      %p110 = scmp.ne.s32.totalorder %s95, %s109
      %p111 = scmp.eq.s32.totalorder %s22, 0
      %p112 = por %p110, %p111
      %s114 = sadd.s32 %s113, 1
      %p117 = scmp.eq.s32.totalorder %s16, 1
      %p118 = scmp.ne.s32.totalorder %s113, %s115
      %p119 = scmp.eq.s32.totalorder %s16, 0
      %p120 = por %p118, %p119
      %p121 = scmp.ne.s32.totalorder %s113, %s115
      %p122 = scmp.eq.s32.totalorder %s21, 1
      %p123 = por %p121, %p122
      %p124 = scmp.ne.s32.totalorder %s115, %s116
      %p125 = scmp.eq.s32.totalorder %s21, 0
      %p126 = por %p124, %p125
      %p127 = scmp.ne.s32.totalorder %s115, %s116
      %p128 = scmp.eq.s32.totalorder %s22, 1
      %p129 = por %p127, %p128
      %p131 = scmp.ne.s32.totalorder %s116, %s130
      %p132 = scmp.eq.s32.totalorder %s22, 0
      %p133 = por %p131, %p132
      %s135 = sadd.s32 %s134, 1
      %p138 = scmp.eq.s32.totalorder %s16, 1
      %p139 = scmp.ne.s32.totalorder %s134, %s136
      %p140 = scmp.eq.s32.totalorder %s16, 0
      %p141 = por %p139, %p140
      %p142 = scmp.ne.s32.totalorder %s134, %s136
      %p143 = scmp.eq.s32.totalorder %s21, 1
      %p144 = por %p142, %p143
      %p145 = scmp.ne.s32.totalorder %s136, %s137
      %p146 = scmp.eq.s32.totalorder %s21, 0
      %p147 = por %p145, %p146
      %p148 = scmp.ne.s32.totalorder %s136, %s137
      %p149 = scmp.eq.s32.totalorder %s22, 1
      %p150 = por %p148, %p149
      %p152 = scmp.ne.s32.totalorder %s137, %s151
      %p153 = scmp.eq.s32.totalorder %s22, 0
      %p154 = por %p152, %p153
      %s155 = ssub.s32 %s16, %s23
      %p156 = scmp.eq.s32.totalorder %s155, 0
      %s158 = sadd.s32 %s157, 1
      %s159 = scalar_select %p156, %s157, %s158
      %p162 = pneg %p156
      %p163 = scmp.eq.s32.totalorder %s16, 1
      %p164 = por %p162, %p163
      %p165 = scmp.ne.s32.totalorder %s157, %s160
      %p166 = scmp.eq.s32.totalorder %s16, 0
      %p167 = por %p165, %p166
      %p168 = scmp.ne.s32.totalorder %s157, %s160
      %p169 = scmp.eq.s32.totalorder %s21, 1
      %p170 = por %p168, %p169
      %p171 = scmp.ne.s32.totalorder %s160, %s161
      %p172 = scmp.eq.s32.totalorder %s21, 0
      %p173 = por %p171, %p172
      %p174 = scmp.ne.s32.totalorder %s160, %s161
      %p175 = scmp.eq.s32.totalorder %s22, 1
      %p176 = por %p174, %p175
      %p178 = scmp.ne.s32.totalorder %s161, %s177
      %p179 = scmp.eq.s32.totalorder %s22, 0
      %p180 = por %p178, %p179
      %p181 = scmp.le.s32.totalorder 1, %s16
      %p182 = scmp.lt.s32.totalorder %s16, 3
      %p183 = pnand %p181, %p182
      %p184 = pneg %p183
      // Predicated region
      $region9: #{tpu_custom_call.1} parent=5 // pred_check
        _
      $region10: #{tpu_custom_call.1} parent=5 // pred_check_branch
        %186 = sbr.rel (%p183) target = $region12
      $region11: #{tpu_custom_call.1} parent=5 // pred_region
        %s187 = ssub.s32 %s16, 1
        // Predicated region
        $region13: #{tpu_custom_call.1} parent=11 // pred_check
          %p188 = pneg %p63
        $region14: #{tpu_custom_call.1} parent=11 // pred_check_branch
          %190 = sbr.rel (%p188) target = $region16
        $region15: #{tpu_custom_call.1} parent=11 // pred_region
          _
        $region16: #{tpu_custom_call.1} parent=11 // pred_fallthru
          _
        // Predicated region
        $region17: #{tpu_custom_call.1} parent=11 // pred_check
          %p191 = pneg %p84
        $region18: #{tpu_custom_call.1} parent=11 // pred_check_branch
          %193 = sbr.rel (%p191) target = $region20
        $region19: #{tpu_custom_call.1} parent=11 // pred_region
          _
        $region20: #{tpu_custom_call.1} parent=11 // pred_fallthru
          _
        // Predicated region
        $region21: #{tpu_custom_call.1} parent=11 // pred_check
          %p194 = pneg %p105
        $region22: #{tpu_custom_call.1} parent=11 // pred_check_branch
          %196 = sbr.rel (%p194) target = $region24
        $region23: #{tpu_custom_call.1} parent=11 // pred_region
          _
        $region24: #{tpu_custom_call.1} parent=11 // pred_fallthru
          _
        // Predicated region
        $region25: #{tpu_custom_call.1} parent=11 // pred_check
          %p197 = pneg %p126
        $region26: #{tpu_custom_call.1} parent=11 // pred_check_branch
          %199 = sbr.rel (%p197) target = $region28
        $region27: #{tpu_custom_call.1} parent=11 // pred_region
          _
        $region28: #{tpu_custom_call.1} parent=11 // pred_fallthru
          _
        // Predicated region
        $region29: #{tpu_custom_call.1} parent=11 // pred_check
          %p200 = pneg %p147
        $region30: #{tpu_custom_call.1} parent=11 // pred_check_branch
          %202 = sbr.rel (%p200) target = $region32
        $region31: #{tpu_custom_call.1} parent=11 // pred_region
          _
        $region32: #{tpu_custom_call.1} parent=11 // pred_fallthru
          _
      $region12: #{tpu_custom_call.1} parent=5 // pred_fallthru
        _
      %p203 = scmp.lt.s32.totalorder %s16, 2
      // Predicated region
      $region33: #{tpu_custom_call.1} parent=5 // pred_check
        %p204 = pneg %p203
      $region34: #{tpu_custom_call.1} parent=5 // pred_check_branch
        %206 = sbr.rel (%p204) target = $region36
      $region35: #{tpu_custom_call.1} parent=5 // pred_region
        // Predicated region
        $region37: #{tpu_custom_call.1} parent=35 // pred_check
          %p207 = pneg %p36
        $region38: #{tpu_custom_call.1} parent=35 // pred_check_branch
          %209 = sbr.rel (%p207) target = $region40
        $region39: #{tpu_custom_call.1} parent=35 // pred_region
          %p210 = scmp.lt.s32.totalorder %s16, 1
          %s211 = scalar_select %p210, %s16, 1
          %s212 = smul.addr %s211, 8
          %s213 = scalar_lea.vmem %s0, %s212
        $region40: #{tpu_custom_call.1} parent=35 // pred_fallthru
          _
      $region36: #{tpu_custom_call.1} parent=5 // pred_fallthru
        _
      %p214 = scmp.le.s32.totalorder 1, %s16
      %p215 = scmp.lt.s32.totalorder %s16, 3
      %p216 = pnand %p214, %p215
      %p217 = pneg %p216
      // Predicated region
      $region41: #{tpu_custom_call.1} parent=5 // pred_check
        _
      $region42: #{tpu_custom_call.1} parent=5 // pred_check_branch
        %219 = sbr.rel (%p216) target = $region44
      $region43: #{tpu_custom_call.1} parent=5 // pred_region
        %s220 = ssub.s32 %s16, 1
        %p221 = scmp.lt.s32.totalorder %s21, 1
        %s222 = scalar_select %p221, %s21, 1
        %s223 = smul.addr %s222, 8
        %s224 = scalar_lea.vmem %s0, %s223
        %p225 = pneg %p42
        %p226 = pneg %p39
        %p227 = pneg %p63
        %p228 = pneg %p60
        %p229 = pneg %p84
        %p230 = pneg %p81
        %p231 = pneg %p105
        %p232 = pneg %p102
        %p233 = pneg %p126
        %p234 = pneg %p123
        %p235 = pneg %p147
        %p236 = pneg %p144
        %p237 = pneg %p173
        %p238 = pneg %p170
        %s239 = sand.u32 %s160, 1
        %s240 = scalar_lea.sflag [#allocation5], %s239
        %s241 = sand.u32 %s160, 1
        %s242 = smul.addr %s241, 16
        %s243 = scalar_lea.vmem [#allocation4], %s242
        %p244 = scmp.lt.s32.totalorder %s21, 1
        %s245 = scalar_select %p244, %s21, 1
        %s246 = smul.addr %s245, 8
        %s247 = scalar_lea.vmem %s0, %s246
        %v248 = vld [vmem:[%s1] sm:$0xff]
        %vm249 = vcmask 15360
        %250 = vst.msk [vmem:[#allocation2] sm:$0xff] %vm249, 0.0
        %vm251 = vcmask 1048528
        %252 = vst.msk [vmem:[#allocation2] sm:$0xff] %vm251, 0.0
        %253 = vst [vmem:[#allocation2 + $0x8] sm:$0xff] 0.0
        %v254 = vld [vmem:[%s247] sm:$0xff]
        %256 = vrot.lane.b32.xlu0 %v254, 2
        %v257 = vpop.permute.xlu0 %256
        %vm259 = vcmask 998416
        %260 = vst.msk [vmem:[#allocation2] sm:$0xff] %vm259, %v257
        %v261 = vld [vmem:[#allocation2] sm:$0xff]
        %v262 = vld [vmem:[#allocation2] sm:$0xff]
        %v263 = vld [vmem:[#allocation2 + $0x8] sm:$0xff]
        %265 = vset.pattern.permute.xlu0 0
        %266 = vperm.xlu0 %265, %v248
        %v267 = vpop.permute.xlu0 %266
        %v269 = vmul.f32 %v267, %v261
        %270 = vset.pattern.permute.xlu0 1
        %271 = vperm.xlu0 %270, %v248
        %v272 = vpop.permute.xlu0 %271
        %v274 = vmul.f32 %v272, %v262
        %v275 = vmul.f32 %v272, %v263
        %278 = vrot.lane.b32.xlu0 %v274, 126
        %v279 = vpop.permute.xlu0 %278
        %280 = vrot.lane.b32.xlu0 %v275, 126
        %v281 = vpop.permute.xlu0 %280
        %vm282 = vcmask 1031168
        %v283 = vsel %vm282, %v279, %v281
        %v285 = vadd.f32 %v269, %v283
        %286 = vset.pattern.permute.xlu0 2
        %287 = vperm.xlu0 %286, %v248
        %v288 = vpop.permute.xlu0 %287
        %v290 = vmul.f32 %v288, %v262
        %v291 = vmul.f32 %v288, %v263
        %294 = vrot.lane.b32.xlu0 %v290, 124
        %v295 = vpop.permute.xlu0 %294
        %296 = vrot.lane.b32.xlu0 %v291, 124
        %v297 = vpop.permute.xlu0 %296
        %vm298 = vcmask 1014784
        %v299 = vsel %vm298, %v295, %v297
        %v301 = vadd.f32 %v285, %v299
        %s302 = sld [smem:[#allocation3]]
        %vm303 = vcmp.gt.f32.partialorder %v301, 0.0
        %v304 = vstv %s302
        %v305 = vmul.f32 %v304, %v301
        %v306 = vsel %vm303, %v301, %v305
        %v307 = vlaneseq
        %v308 = vand.u32 %v307, 127
        %vm309 = vcmp.lt.s32.totalorder %v308, 120
        %v310 = vsel %vm309, 1, 0
        %vm311 = vcmp.eq.s32.totalorder %v310, 1
        %v312 = vsel %vm311, %v306, 0.0
        %313 = vadd.xlane.f32.xlu0 %v312
        %v314 = vpop.xlane.xlu0 %313
        %v315 = vrot.slane %v314, 4
        %v316 = vadd.f32 %v314, %v315
        %v317 = vrot.slane %v316, 2
        %v318 = vadd.f32 %v316, %v317
        %v319 = vrot.slane %v318, 1
        %v320 = vadd.f32 %v318, %v319
        %v321 = vmul.f32 %v320, 0.0010416667
        %v322 = vsub.f32 %v312, %v321
        %v323 = vsel %vm311, %v322, 0.0
        %v324 = vmul.f32 %v323, %v323
        %325 = vadd.xlane.f32.xlu0 %v324
        %v326 = vpop.xlane.xlu0 %325
        %v327 = vrot.slane %v326, 4
        %v328 = vadd.f32 %v326, %v327
        %v329 = vrot.slane %v328, 2
        %v330 = vadd.f32 %v328, %v329
        %v331 = vrot.slane %v330, 1
        %v332 = vadd.f32 %v330, %v331
        %v333 = vmul.f32 %v332, 0.0010416667
        %v334 = vadd.f32 %v333, 1e-08
        %v335 = vrsqrt.pop %v334
        %v336 = vld [vmem:[%s3] sm:$0xff]
        %v337 = vmul.f32 %v323, %v335
        %339 = vset.pattern.permute.xlu0 0
        %340 = vperm.xlu0 %339, %v336
        %v341 = vpop.permute.xlu0 %340
        %v343 = vmul.f32 %v341, %v337
        %v344 = vld [vmem:[%s4] sm:$0xff]
        %346 = vset.pattern.permute.xlu0 0
        %347 = vperm.xlu0 %346, %v344
        %v348 = vpop.permute.xlu0 %347
        %v350 = vadd.f32 %v343, %v348
        %v351 = vld [vmem:[%s5] sm:$0xff]
        %v352 = vld [vmem:[%s5 + $0x8] sm:$0xff]
        %354 = vset.pattern.permute.xlu0 0
        %355 = vperm.xlu0 %354, %v351
        %v356 = vpop.permute.xlu0 %355
        %359 = vset.pattern.permute.xlu0 0
        %360 = vperm.xlu0 %359, %v352
        %v361 = vpop.permute.xlu0 %360
        %v363 = vlaneseq
        %v364 = vshrl.u32 %v363, 7
        %v365 = vsub.s32 0, %v364
        %v366 = vrot.slane %v350, %v365
        %v367 = vmul.f32 %v356, %v366
        %v368 = vmul.f32 %v361, %v366
        %369 = vset.pattern.permute.xlu0 1
        %370 = vperm.xlu0 %369, %v351
        %v371 = vpop.permute.xlu0 %370
        %373 = vset.pattern.permute.xlu0 1
        %374 = vperm.xlu0 %373, %v352
        %v375 = vpop.permute.xlu0 %374
        %v377 = vlaneseq
        %v378 = vshrl.u32 %v377, 7
        %v379 = vsub.s32 1, %v378
        %v380 = vrot.slane %v350, %v379
        %v381 = vmul.f32 %v371, %v380
        %v382 = vmul.f32 %v375, %v380
        %v383 = vadd.f32 %v367, %v381
        %v384 = vadd.f32 %v368, %v382
        %385 = vset.pattern.permute.xlu0 2
        %386 = vperm.xlu0 %385, %v351
        %v387 = vpop.permute.xlu0 %386
        %389 = vset.pattern.permute.xlu0 2
        %390 = vperm.xlu0 %389, %v352
        %v391 = vpop.permute.xlu0 %390
        %v393 = vlaneseq
        %v394 = vshrl.u32 %v393, 7
        %v395 = vsub.s32 2, %v394
        %v396 = vrot.slane %v350, %v395
        %v397 = vmul.f32 %v387, %v396
        %v398 = vmul.f32 %v391, %v396
        %v399 = vadd.f32 %v383, %v397
        %v400 = vadd.f32 %v384, %v398
        %401 = vset.pattern.permute.xlu0 3
        %402 = vperm.xlu0 %401, %v351
        %v403 = vpop.permute.xlu0 %402
        %405 = vset.pattern.permute.xlu0 3
        %406 = vperm.xlu0 %405, %v352
        %v407 = vpop.permute.xlu0 %406
        %v409 = vlaneseq
        %v410 = vshrl.u32 %v409, 7
        %v411 = vsub.s32 3, %v410
        %v412 = vrot.slane %v350, %v411
        %v413 = vmul.f32 %v403, %v412
        %v414 = vmul.f32 %v407, %v412
        %v415 = vadd.f32 %v399, %v413
        %v416 = vadd.f32 %v400, %v414
        %417 = vset.pattern.permute.xlu0 4
        %418 = vperm.xlu0 %417, %v351
        %v419 = vpop.permute.xlu0 %418
        %421 = vset.pattern.permute.xlu0 4
        %422 = vperm.xlu0 %421, %v352
        %v423 = vpop.permute.xlu0 %422
        %v425 = vlaneseq
        %v426 = vshrl.u32 %v425, 7
        %v427 = vsub.s32 4, %v426
        %v428 = vrot.slane %v350, %v427
        %v429 = vmul.f32 %v419, %v428
        %v430 = vmul.f32 %v423, %v428
        %v431 = vadd.f32 %v415, %v429
        %v432 = vadd.f32 %v416, %v430
        %433 = vset.pattern.permute.xlu0 5
        %434 = vperm.xlu0 %433, %v351
        %v435 = vpop.permute.xlu0 %434
        %437 = vset.pattern.permute.xlu0 5
        %438 = vperm.xlu0 %437, %v352
        %v439 = vpop.permute.xlu0 %438
        %v441 = vlaneseq
        %v442 = vshrl.u32 %v441, 7
        %v443 = vsub.s32 5, %v442
        %v444 = vrot.slane %v350, %v443
        %v445 = vmul.f32 %v435, %v444
        %v446 = vmul.f32 %v439, %v444
        %v447 = vadd.f32 %v431, %v445
        %v448 = vadd.f32 %v432, %v446
        %449 = vset.pattern.permute.xlu0 6
        %450 = vperm.xlu0 %449, %v351
        %v451 = vpop.permute.xlu0 %450
        %453 = vset.pattern.permute.xlu0 6
        %454 = vperm.xlu0 %453, %v352
        %v455 = vpop.permute.xlu0 %454
        %v457 = vlaneseq
        %v458 = vshrl.u32 %v457, 7
        %v459 = vsub.s32 6, %v458
        %v460 = vrot.slane %v350, %v459
        %v461 = vmul.f32 %v451, %v460
        %v462 = vmul.f32 %v455, %v460
        %v463 = vadd.f32 %v447, %v461
        %v464 = vadd.f32 %v448, %v462
        %465 = vset.pattern.permute.xlu0 7
        %466 = vperm.xlu0 %465, %v351
        %v467 = vpop.permute.xlu0 %466
        %469 = vset.pattern.permute.xlu0 7
        %470 = vperm.xlu0 %469, %v352
        %v471 = vpop.permute.xlu0 %470
        %v473 = vlaneseq
        %v474 = vshrl.u32 %v473, 7
        %v475 = vsub.s32 7, %v474
        %v476 = vrot.slane %v350, %v475
        %v477 = vmul.f32 %v467, %v476
        %v478 = vmul.f32 %v471, %v476
        %v479 = vadd.f32 %v463, %v477
        %v480 = vadd.f32 %v464, %v478
        %481 = vst [vmem:[%s243] sm:$0xff] %v479
        %482 = vst [vmem:[%s243 + $0x8] sm:$0xff] %v480
        %s483 = sand.u32 %s160, 1
        %s484 = scalar_lea.sflag [#allocation5], %s483
        %s485 = sand.u32 %s160, 1
        %s486 = smul.addr %s485, 16
        %s487 = scalar_lea.vmem [#allocation4], %s486
        // Predicated region
        $region45: #{tpu_custom_call.1} parent=43 // pred_check
          %p488 = pneg %p170
        $region46: #{tpu_custom_call.1} parent=43 // pred_check_branch
          %490 = sbr.rel (%p488) target = $region48
        $region47: #{tpu_custom_call.1} parent=43 // pred_region
          %s492 = ssub.s32 256, 256
          %493 = vsyncadd %s484, %s492
          %s494 = smul.addr %s21, 2
          %s495 = smul.addr %s494, 128
          %s496 = scalar_lea.hbm %s6, %s495
          %s497 = sshll.u32 %s487, 4
          %s498 = int_to_ptr.vmem [resolvable:$true] %s497
          %503 = dma.vmem_to_hbm [thread:$0]  %s498, 256, %s496, %s484, 128, 128, 8
        $region48: #{tpu_custom_call.1} parent=43 // pred_fallthru
          _
      $region44: #{tpu_custom_call.1} parent=5 // pred_fallthru
        _
      %p504 = scmp.le.s32.totalorder 2, %s16
      // Predicated region
      $region49: #{tpu_custom_call.1} parent=5 // pred_check
        %p505 = pneg %p504
      $region50: #{tpu_custom_call.1} parent=5 // pred_check_branch
        %507 = sbr.rel (%p505) target = $region52
      $region51: #{tpu_custom_call.1} parent=5 // pred_region
        %s508 = ssub.s32 %s16, 2
        // Predicated region
        $region53: #{tpu_custom_call.1} parent=51 // pred_check
          %p509 = pneg %p176
        $region54: #{tpu_custom_call.1} parent=51 // pred_check_branch
          %511 = sbr.rel (%p509) target = $region56
        $region55: #{tpu_custom_call.1} parent=51 // pred_region
          %s512 = sand.u32 %s161, 1
          %s513 = scalar_lea.sflag [#allocation5], %s512
          %s514 = sand.u32 %s161, 1
          %s515 = smul.addr %s514, 16
          %s516 = scalar_lea.vmem [#allocation4], %s515
          %517 = dma.done %s513, 256
        $region56: #{tpu_custom_call.1} parent=51 // pred_fallthru
          _
      $region52: #{tpu_custom_call.1} parent=5 // pred_fallthru
        _
    $region6: #{tpu_custom_call.1} parent=1 // loop_footer
      %s20 = sadd.s32 1, %s16
    $region7: #{tpu_custom_call.1} parent=1 // loop_footer_branch
      %15 = sbr.rel target = $region3
    $region8: #{tpu_custom_call.1} parent=1 // loop_exit
      _
    %518 = vsyncpa [#allocation5], 1
    %s519 = scalar_lea.sflag [#allocation5], 1
    %520 = vsyncpa %s519, 1

</llo_original>
